<compile_context>
chip_gen: v7x
topology: tpu7x:2x2x1
jax: 0.10.0
libtpu: 0.0.40
codegen_flags: <defaults>
</compile_context>

<pallas_src>
import functools
import math

import jax
import jax.numpy as jnp
from jax.experimental import pallas as pl
from jax.experimental.pallas import tpu as pltpu

_LANE = 128      # lane width: pad channel (last) dims to this
_ROW = 16        # pad row dims to a multiple of this (bf16 sublane packing)


def _round_up(v, m):
    return ((v + m - 1) // m) * m


# ---------------------------------------------------------------------------
# Fused Pallas kernel: all GIN layers + pooling + readout MLP
# ---------------------------------------------------------------------------
def _make_net_kernel(num_layers):
    def kernel(adj_ref, pool_ref, x_ref, cw_ref, cb_ref, mw_ref, mb_ref, o_ref):
        a = adj_ref[...]            # [NP, NP] bf16  A_hat = A + I (self-loop folded)
        x = x_ref[...]              # [NP, CP] bf16  padded node features

        # --- GIN layers: x stays resident, adjacency loaded once ------------
        for l in range(num_layers):                      # static unroll
            w = cw_ref[l]           # [2, CP, CP] bf16  (w1 with BN folded, w2)
            b = cb_ref[l]           # [2, CP]     f32   (b1 with BN folded, b2)
            # GINConv (train_eps=False): A_hat @ x == x_i + sum_{j->i} x_j
            agg = jnp.dot(a, x, preferred_element_type=jnp.float32)        # f32
            # MLP([C_in, H, H]): Linear -> BN(eval, folded) -> ReLU -> Linear
            h = jnp.dot(agg.astype(jnp.bfloat16), w[0],
                        preferred_element_type=jnp.float32) + b[0:1, :]
            h = jnp.maximum(h, 0.0)                                         # f32
            h = jnp.dot(h.astype(jnp.bfloat16), w[1],
                        preferred_element_type=jnp.float32) + b[1:2, :]
            # outer .relu() in Net.forward; cast back to bf16 for next matmul
            x = jnp.maximum(h, 0.0).astype(jnp.bfloat16)

        # --- global_add_pool + readout MLP -----------------------------------
        pooled = jnp.dot(pool_ref[...], x, preferred_element_type=jnp.float32)
        mw = mw_ref[...]            # [2, CP, CP] bf16
        mb = mb_ref[...]            # [2, CP]     f32
        h = jnp.dot(pooled.astype(jnp.bfloat16), mw[0],
                    preferred_element_type=jnp.float32) + mb[0:1, :]
        h = jnp.maximum(h, 0.0)
        # Dropout(0.5) is eval-mode identity.
        o_ref[...] = jnp.dot(h.astype(jnp.bfloat16), mw[1],
                             preferred_element_type=jnp.float32) + mb[1:2, :]

    return kernel


# ---------------------------------------------------------------------------
# Parameter init (deterministic, synthetic) + fold/pack/pad
# ---------------------------------------------------------------------------
def _mlp_raw(key, c_in, c_hid, c_out):
    k1, k2, k3, k4, k5, k6 = jax.random.split(key, 6)
    return {
        "w1": jax.random.normal(k1, (c_in, c_hid), jnp.float32) * 0.1,
        "b1": jax.random.normal(k2, (c_hid,), jnp.float32) * 0.1,
        "w2": jax.random.normal(k3, (c_hid, c_out), jnp.float32) * 0.1,
        "b2": jax.random.normal(k4, (c_out,), jnp.float32) * 0.1,
        "gamma": 1.0 + 0.1 * jax.random.normal(k5, (c_hid,), jnp.float32),
        "beta": 0.1 * jax.random.normal(k6, (c_hid,), jnp.float32),
        # eval-mode running stats (fold real trained stats here for parity)
        "mean": jnp.zeros((c_hid,), jnp.float32),
        "var": jnp.ones((c_hid,), jnp.float32),
    }


def _fold_and_pad(p, cp):
    """Fold eval-mode BN into (w1, b1) and zero-pad everything to [cp, cp]."""
    g = p["gamma"] / jnp.sqrt(p["var"] + 1e-5)
    b = p["beta"] - p["mean"] * g
    w1 = p["w1"] * g[None, :]
    b1 = p["b1"] * g + b
    w1p = jnp.zeros((cp, cp), jnp.float32).at[: w1.shape[0], : w1.shape[1]].set(w1)
    w2p = jnp.zeros((cp, cp), jnp.float32).at[: p["w2"].shape[0], : p["w2"].shape[1]].set(p["w2"])
    b1p = jnp.zeros((cp,), jnp.float32).at[: b1.shape[0]].set(b1)
    b2p = jnp.zeros((cp,), jnp.float32).at[: p["b2"].shape[0]].set(p["b2"])
    return jnp.stack([w1p, w2p]), jnp.stack([b1p, b2p])   # [2,cp,cp], [2,cp]


def init_net_params(key, in_channels, hidden_channels, out_channels, num_layers):
    cp = _round_up(max(in_channels, hidden_channels, out_channels, _LANE), _LANE)
    keys = jax.random.split(key, num_layers + 1)
    cws, cbs = [], []
    c_in = in_channels
    for i in range(num_layers):
        w, b = _fold_and_pad(_mlp_raw(keys[i], c_in, hidden_channels, hidden_channels), cp)
        cws.append(w)
        cbs.append(b)
        c_in = hidden_channels
    mw, mb = _fold_and_pad(_mlp_raw(keys[-1], hidden_channels, hidden_channels, out_channels), cp)
    return {
        # Weights go to the MXU as bf16 operands; biases stay f32 (VPU add).
        "cw": jnp.stack(cws).astype(jnp.bfloat16),   # [L, 2, CP, CP] bf16
        "cb": jnp.stack(cbs),                        # [L, 2, CP]     f32
        "mw": mw.astype(jnp.bfloat16),               # [2, CP, CP]    bf16
        "mb": mb,                                    # [2, CP]        f32
    }


# ---------------------------------------------------------------------------
# Full forward: one jitted program, one fused pallas_call
# ---------------------------------------------------------------------------
@functools.partial(jax.jit, static_argnames=("num_graphs", "out_channels"))
def net_forward(x, edge_index, batch, packed, num_graphs, out_channels):
    n, c_in = x.shape
    cp = packed["cw"].shape[-1]
    num_layers = packed["cw"].shape[0]
    np_ = _round_up(max(n, _ROW), _ROW)
    gp = _round_up(max(num_graphs, _ROW), _ROW)

    # A_hat[i, j] = #edges (j -> i), self-loop folded via in-place diagonal add
    # (no jnp.eye N^2 temporary).  Small integer counts -> exact in bf16.
    diag = jnp.arange(np_, dtype=jnp.int32)
    adj = (
        jnp.zeros((np_, np_), jnp.float32)
        .at[edge_index[1], edge_index[0]].add(1.0)
        .at[diag, diag].add(1.0)
    ).astype(jnp.bfloat16)

    # Pooling matrix: P[g, i] = 1 if node i belongs to graph g (padded nodes -> -1).
    batch_p = jnp.full((np_,), -1, jnp.int32).at[:n].set(batch.astype(jnp.int32))
    pool = (batch_p[None, :] == jnp.arange(gp, dtype=jnp.int32)[:, None]).astype(jnp.bfloat16)

    # Lane-dense, zero-padded node features (bf16 MXU operand).
    x_p = jnp.zeros((np_, cp), jnp.bfloat16).at[:n, :c_in].set(x.astype(jnp.bfloat16))

    # --- VMEM budget: size the scoped limit to the real working set ----------
    def nbytes(shape, dtype):
        return math.prod(shape) * jnp.dtype(dtype).itemsize

    working_set = (
        nbytes((np_, np_), jnp.bfloat16)            # adj
        + nbytes((gp, np_), jnp.bfloat16)           # pool
        + nbytes((np_, cp), jnp.bfloat16)           # x
        + nbytes((num_layers, 2, cp, cp), jnp.bfloat16)  # cw
        + nbytes((num_layers, 2, cp), jnp.float32)  # cb
        + nbytes((2, cp, cp), jnp.bfloat16)         # mw
        + nbytes((2, cp), jnp.float32)              # mb
        + nbytes((gp, cp), jnp.float32)             # out
    )
    # 2x headroom for intermediates/layout; clamp to 64 MiB (safe on v7x;
    # raise toward 128 MiB on v5e/v6e when graphs get large).
    vmem_limit = min(max(2 * working_set + (8 << 20), 32 << 20), 64 << 20)

    # --- advisory cost estimate ----------------------------------------------
    flops = (
        num_layers * (2 * np_ * np_ * cp + 4 * np_ * cp * cp)  # agg + 2 linears
        + 2 * gp * np_ * cp                                     # pooling matmul
        + 4 * gp * cp * cp                                      # readout MLP
    )
    cost = pl.CostEstimate(flops=flops, transcendentals=0,
                           bytes_accessed=working_set)

    vmem = pl.BlockSpec(memory_space=pltpu.MemorySpace.VMEM)
    out_p = pl.pallas_call(
        _make_net_kernel(num_layers),
        out_shape=jax.ShapeDtypeStruct((gp, cp), jnp.float32),
        in_specs=[vmem] * 7,
        out_specs=vmem,
        compiler_params=pltpu.CompilerParams(vmem_limit_bytes=vmem_limit),
        cost_estimate=cost,
    )(adj, pool, x_p, packed["cw"], packed["cb"], packed["mw"], packed["mb"])

    return out_p[:num_graphs, :out_channels]


# ---------------------------------------------------------------------------
if __name__ == "__main__":
    N = 16              # nodes
    IN_CHANNELS = 4
    HIDDEN = 32
    OUT_CHANNELS = 8
    NUM_LAYERS = 2
    NUM_GRAPHS = 2

    key = jax.random.PRNGKey(0)
    k_x, k_p = jax.random.split(key)

    x = jax.random.normal(k_x, (N, IN_CHANNELS), jnp.float32)

    # Two ring graphs of 8 nodes each, bidirectional edges.
    src, dst = [], []
    for g in range(NUM_GRAPHS):
        base = g * 8
        for i in range(8):
            a = base + i
            b = base + (i + 1) % 8
            src += [a, b]
            dst += [b, a]
    edge_index = jnp.array([src, dst], dtype=jnp.int32)    # [2, 32]
    batch = jnp.array([0] * 8 + [1] * 8, dtype=jnp.int32)  # [16]

    params = init_net_params(k_p, IN_CHANNELS, HIDDEN, OUT_CHANNELS, NUM_LAYERS)

    out = net_forward(x, edge_index, batch, params, NUM_GRAPHS, OUT_CHANNELS)
    out = jax.block_until_ready(out)
    assert out.shape == (NUM_GRAPHS, OUT_CHANNELS), out.shape
    print("KERNEL_OK")
</pallas_src>

<mosaic_0001>
module attributes {stable_mosaic.version = 11 : i64} {
  func.func private @main(%arg0: i32) attributes {dimension_semantics = [#tpu.dimension_semantics<core_parallel>], iteration_bounds = array<i64: 2>, tpu.core_type = #tpu.core_type<sc_scalar_subcore>, window_params = []} {
    return
  }
}

module attributes {stable_mosaic.version = 11 : i64} {
  func.func private @main(%arg0: i32) attributes {dimension_semantics = [#tpu.dimension_semantics<core_parallel>], iteration_bounds = array<i64: 2>, tpu.core_type = #tpu.core_type<sc_scalar_subcore>, window_params = []} {
    return
  }
}

module attributes {stable_mosaic.version = 11 : i64} {
  func.func @kernel(%arg0: memref<16x16xbf16, #tpu.memory_space<vmem>>, %arg1: memref<16x16xbf16, #tpu.memory_space<vmem>>, %arg2: memref<16x128xbf16, #tpu.memory_space<vmem>>, %arg3: memref<2x2x128x128xbf16, #tpu.memory_space<vmem>>, %arg4: memref<2x2x128xf32, #tpu.memory_space<vmem>>, %arg5: memref<2x128x128xbf16, #tpu.memory_space<vmem>>, %arg6: memref<2x128xf32, #tpu.memory_space<vmem>>, %arg7: memref<16x128xf32, #tpu.memory_space<vmem>>) attributes {dimension_semantics = [], scalar_prefetch = 0 : i64, scratch_operands = 0 : i64, tpu.core_type = #tpu.core_type<tc>} {
    %c0 = arith.constant 0 : index
    %c0_0 = arith.constant 0 : index
    %0 = vector.load %arg0[%c0, %c0_0] : memref<16x16xbf16, #tpu.memory_space<vmem>>, vector<16x16xbf16>
    %c0_1 = arith.constant 0 : index
    %c0_2 = arith.constant 0 : index
    %1 = vector.load %arg2[%c0_1, %c0_2] : memref<16x128xbf16, #tpu.memory_space<vmem>>, vector<16x128xbf16>
    %c0_3 = arith.constant 0 : index
    %c0_4 = arith.constant 0 : index
    %c0_5 = arith.constant 0 : index
    %c0_6 = arith.constant 0 : index
    %2 = vector.load %arg3[%c0_3, %c0_4, %c0_5, %c0_6] : memref<2x2x128x128xbf16, #tpu.memory_space<vmem>>, vector<1x2x128x128xbf16>
    %3 = vector.shape_cast %2 : vector<1x2x128x128xbf16> to vector<2x128x128xbf16>
    %c0_7 = arith.constant 0 : index
    %c0_8 = arith.constant 0 : index
    %c0_9 = arith.constant 0 : index
    %4 = vector.load %arg4[%c0_7, %c0_8, %c0_9] : memref<2x2x128xf32, #tpu.memory_space<vmem>>, vector<1x2x128xf32>
    %5 = vector.shape_cast %4 : vector<1x2x128xf32> to vector<2x128xf32>
    %cst = arith.constant dense<0.000000e+00> : vector<16x128xf32>
    %6 = tpu.matmul %0, %1, %cst {dimension_numbers = #tpu.dot_dimension_numbers<[1], [0], [0], [1], [0, 0, 1, 1], [], []>} : vector<16x16xbf16>, vector<16x128xbf16>, vector<16x128xf32> -> vector<16x128xf32>
    %7 = arith.truncf %6 : vector<16x128xf32> to vector<16x128xbf16>
    %8 = vector.extract_strided_slice %3 {offsets = [0, 0, 0], sizes = [1, 128, 128], strides = [1, 1, 1]} : vector<2x128x128xbf16> to vector<1x128x128xbf16>
    %9 = vector.shape_cast %8 : vector<1x128x128xbf16> to vector<128x128xbf16>
    %cst_10 = arith.constant dense<0.000000e+00> : vector<16x128xf32>
    %10 = tpu.matmul %7, %9, %cst_10 {dimension_numbers = #tpu.dot_dimension_numbers<[1], [0], [0], [1], [0, 0, 1, 1], [], []>} : vector<16x128xbf16>, vector<128x128xbf16>, vector<16x128xf32> -> vector<16x128xf32>
    %11 = vector.extract_strided_slice %5 {offsets = [0, 0], sizes = [1, 128], strides = [1, 1]} : vector<2x128xf32> to vector<1x128xf32>
    %12 = vector.broadcast %11 : vector<1x128xf32> to vector<16x128xf32>
    %13 = arith.addf %10, %12 : vector<16x128xf32>
    %cst_11 = arith.constant 0.000000e+00 : f32
    %14 = vector.broadcast %cst_11 : f32 to vector<16x128xf32>
    %15 = arith.maximumf %13, %14 : vector<16x128xf32>
    %16 = arith.truncf %15 : vector<16x128xf32> to vector<16x128xbf16>
    %17 = vector.extract_strided_slice %3 {offsets = [1, 0, 0], sizes = [1, 128, 128], strides = [1, 1, 1]} : vector<2x128x128xbf16> to vector<1x128x128xbf16>
    %18 = vector.shape_cast %17 : vector<1x128x128xbf16> to vector<128x128xbf16>
    %cst_12 = arith.constant dense<0.000000e+00> : vector<16x128xf32>
    %19 = tpu.matmul %16, %18, %cst_12 {dimension_numbers = #tpu.dot_dimension_numbers<[1], [0], [0], [1], [0, 0, 1, 1], [], []>} : vector<16x128xbf16>, vector<128x128xbf16>, vector<16x128xf32> -> vector<16x128xf32>
    %20 = vector.extract_strided_slice %5 {offsets = [1, 0], sizes = [1, 128], strides = [1, 1]} : vector<2x128xf32> to vector<1x128xf32>
    %21 = vector.broadcast %20 : vector<1x128xf32> to vector<16x128xf32>
    %22 = arith.addf %19, %21 : vector<16x128xf32>
    %cst_13 = arith.constant 0.000000e+00 : f32
    %23 = vector.broadcast %cst_13 : f32 to vector<16x128xf32>
    %24 = arith.maximumf %22, %23 : vector<16x128xf32>
    %25 = arith.truncf %24 : vector<16x128xf32> to vector<16x128xbf16>
    %c1 = arith.constant 1 : index
    %c0_14 = arith.constant 0 : index
    %c0_15 = arith.constant 0 : index
    %c0_16 = arith.constant 0 : index
    %26 = vector.load %arg3[%c1, %c0_14, %c0_15, %c0_16] : memref<2x2x128x128xbf16, #tpu.memory_space<vmem>>, vector<1x2x128x128xbf16>
    %27 = vector.shape_cast %26 : vector<1x2x128x128xbf16> to vector<2x128x128xbf16>
    %c1_17 = arith.constant 1 : index
    %c0_18 = arith.constant 0 : index
    %c0_19 = arith.constant 0 : index
    %28 = vector.load %arg4[%c1_17, %c0_18, %c0_19] : memref<2x2x128xf32, #tpu.memory_space<vmem>>, vector<1x2x128xf32>
    %29 = vector.shape_cast %28 : vector<1x2x128xf32> to vector<2x128xf32>
    %cst_20 = arith.constant dense<0.000000e+00> : vector<16x128xf32>
    %30 = tpu.matmul %0, %25, %cst_20 {dimension_numbers = #tpu.dot_dimension_numbers<[1], [0], [0], [1], [0, 0, 1, 1], [], []>} : vector<16x16xbf16>, vector<16x128xbf16>, vector<16x128xf32> -> vector<16x128xf32>
    %31 = arith.truncf %30 : vector<16x128xf32> to vector<16x128xbf16>
    %32 = vector.extract_strided_slice %27 {offsets = [0, 0, 0], sizes = [1, 128, 128], strides = [1, 1, 1]} : vector<2x128x128xbf16> to vector<1x128x128xbf16>
    %33 = vector.shape_cast %32 : vector<1x128x128xbf16> to vector<128x128xbf16>
    %cst_21 = arith.constant dense<0.000000e+00> : vector<16x128xf32>
    %34 = tpu.matmul %31, %33, %cst_21 {dimension_numbers = #tpu.dot_dimension_numbers<[1], [0], [0], [1], [0, 0, 1, 1], [], []>} : vector<16x128xbf16>, vector<128x128xbf16>, vector<16x128xf32> -> vector<16x128xf32>
    %35 = vector.extract_strided_slice %29 {offsets = [0, 0], sizes = [1, 128], strides = [1, 1]} : vector<2x128xf32> to vector<1x128xf32>
    %36 = vector.broadcast %35 : vector<1x128xf32> to vector<16x128xf32>
    %37 = arith.addf %34, %36 : vector<16x128xf32>
    %cst_22 = arith.constant 0.000000e+00 : f32
    %38 = vector.broadcast %cst_22 : f32 to vector<16x128xf32>
    %39 = arith.maximumf %37, %38 : vector<16x128xf32>
    %40 = arith.truncf %39 : vector<16x128xf32> to vector<16x128xbf16>
    %41 = vector.extract_strided_slice %27 {offsets = [1, 0, 0], sizes = [1, 128, 128], strides = [1, 1, 1]} : vector<2x128x128xbf16> to vector<1x128x128xbf16>
    %42 = vector.shape_cast %41 : vector<1x128x128xbf16> to vector<128x128xbf16>
    %cst_23 = arith.constant dense<0.000000e+00> : vector<16x128xf32>
    %43 = tpu.matmul %40, %42, %cst_23 {dimension_numbers = #tpu.dot_dimension_numbers<[1], [0], [0], [1], [0, 0, 1, 1], [], []>} : vector<16x128xbf16>, vector<128x128xbf16>, vector<16x128xf32> -> vector<16x128xf32>
    %44 = vector.extract_strided_slice %29 {offsets = [1, 0], sizes = [1, 128], strides = [1, 1]} : vector<2x128xf32> to vector<1x128xf32>
    %45 = vector.broadcast %44 : vector<1x128xf32> to vector<16x128xf32>
    %46 = arith.addf %43, %45 : vector<16x128xf32>
    %cst_24 = arith.constant 0.000000e+00 : f32
    %47 = vector.broadcast %cst_24 : f32 to vector<16x128xf32>
    %48 = arith.maximumf %46, %47 : vector<16x128xf32>
    %49 = arith.truncf %48 : vector<16x128xf32> to vector<16x128xbf16>
    %c0_25 = arith.constant 0 : index
    %c0_26 = arith.constant 0 : index
    %50 = vector.load %arg1[%c0_25, %c0_26] : memref<16x16xbf16, #tpu.memory_space<vmem>>, vector<16x16xbf16>
    %cst_27 = arith.constant dense<0.000000e+00> : vector<16x128xf32>
    %51 = tpu.matmul %50, %49, %cst_27 {dimension_numbers = #tpu.dot_dimension_numbers<[1], [0], [0], [1], [0, 0, 1, 1], [], []>} : vector<16x16xbf16>, vector<16x128xbf16>, vector<16x128xf32> -> vector<16x128xf32>
    %c0_28 = arith.constant 0 : index
    %c0_29 = arith.constant 0 : index
    %c0_30 = arith.constant 0 : index
    %52 = vector.load %arg5[%c0_28, %c0_29, %c0_30] : memref<2x128x128xbf16, #tpu.memory_space<vmem>>, vector<2x128x128xbf16>
    %c0_31 = arith.constant 0 : index
    %c0_32 = arith.constant 0 : index
    %53 = vector.load %arg6[%c0_31, %c0_32] : memref<2x128xf32, #tpu.memory_space<vmem>>, vector<2x128xf32>
    %54 = arith.truncf %51 : vector<16x128xf32> to vector<16x128xbf16>
    %55 = vector.extract_strided_slice %52 {offsets = [0, 0, 0], sizes = [1, 128, 128], strides = [1, 1, 1]} : vector<2x128x128xbf16> to vector<1x128x128xbf16>
    %56 = vector.shape_cast %55 : vector<1x128x128xbf16> to vector<128x128xbf16>
    %cst_33 = arith.constant dense<0.000000e+00> : vector<16x128xf32>
    %57 = tpu.matmul %54, %56, %cst_33 {dimension_numbers = #tpu.dot_dimension_numbers<[1], [0], [0], [1], [0, 0, 1, 1], [], []>} : vector<16x128xbf16>, vector<128x128xbf16>, vector<16x128xf32> -> vector<16x128xf32>
    %58 = vector.extract_strided_slice %53 {offsets = [0, 0], sizes = [1, 128], strides = [1, 1]} : vector<2x128xf32> to vector<1x128xf32>
    %59 = vector.broadcast %58 : vector<1x128xf32> to vector<16x128xf32>
    %60 = arith.addf %57, %59 : vector<16x128xf32>
    %cst_34 = arith.constant 0.000000e+00 : f32
    %61 = vector.broadcast %cst_34 : f32 to vector<16x128xf32>
    %62 = arith.maximumf %60, %61 : vector<16x128xf32>
    %63 = arith.truncf %62 : vector<16x128xf32> to vector<16x128xbf16>
    %64 = vector.extract_strided_slice %52 {offsets = [1, 0, 0], sizes = [1, 128, 128], strides = [1, 1, 1]} : vector<2x128x128xbf16> to vector<1x128x128xbf16>
    %65 = vector.shape_cast %64 : vector<1x128x128xbf16> to vector<128x128xbf16>
    %cst_35 = arith.constant dense<0.000000e+00> : vector<16x128xf32>
    %66 = tpu.matmul %63, %65, %cst_35 {dimension_numbers = #tpu.dot_dimension_numbers<[1], [0], [0], [1], [0, 0, 1, 1], [], []>} : vector<16x128xbf16>, vector<128x128xbf16>, vector<16x128xf32> -> vector<16x128xf32>
    %67 = vector.extract_strided_slice %53 {offsets = [1, 0], sizes = [1, 128], strides = [1, 1]} : vector<2x128xf32> to vector<1x128xf32>
    %68 = vector.broadcast %67 : vector<1x128xf32> to vector<16x128xf32>
    %69 = arith.addf %66, %68 : vector<16x128xf32>
    %c0_36 = arith.constant 0 : index
    %c0_37 = arith.constant 0 : index
    %70 = vector.load %arg7[%c0_36, %c0_37] : memref<16x128xf32, #tpu.memory_space<vmem>>, vector<16x128xf32>
    tpu.vector_store %arg7[%c0_36, %c0_37], %69 {strides = array<i32>} : memref<16x128xf32, #tpu.memory_space<vmem>>, vector<16x128xf32>,
    return
  }
}

</mosaic_0001>

<llo_original>
// kernel: net_forward.1
$region0: #{net_forward.1}
  #allocation0 [shape = 'u32[]', space=smem, size = 0x4, offset = 0x4, fixed_abs, tag = 'smem constant byte address 0x4 - core index']
  #allocation1 [shape = 'u32[144,128]{1,0:T(1,128)}', space=vmem, size = 0x12000, scoped, tag = 'internal scratch']
  %s0 = inlined_call_operand.vmem [shape: bf16[16,16], index: 0, kind: input, shape index: {}]
  %s1 = inlined_call_operand.vmem [shape: bf16[16,16], index: 1, kind: input, shape index: {}]
  %s2 = inlined_call_operand.vmem [shape: bf16[16,128], index: 2, kind: input, shape index: {}]
  %s3 = inlined_call_operand.vmem [shape: bf16[2,2,128,128], index: 3, kind: input, shape index: {}]
  %s4 = inlined_call_operand.vmem [shape: f32[2,2,128], index: 4, kind: input, shape index: {}]
  %s5 = inlined_call_operand.vmem [shape: bf16[2,128,128], index: 5, kind: input, shape index: {}]
  %s6 = inlined_call_operand.vmem [shape: f32[2,128], index: 6, kind: input, shape index: {}]
  %s7 = inlined_call_operand.vmem [shape: f32[16,128], index: 7, kind: output, shape index: {}]
  %s8 = sld [smem:[#allocation0]]
  $region38: #{net_forward.1} parent=0
    _
  %s10 = ssub.s32 1, %s8
  %s11 = scalar_select 0, %s10, %s8
  // Predicated region
  $region2: #{net_forward.1} parent=0 // pred_check
    _
  $region3: #{net_forward.1} parent=0 // pred_check_branch
    %13 = sbr.rel (0) target = $region5
  $region4: #{net_forward.1} parent=0 // pred_region
    _
  $region5: #{net_forward.1} parent=0 // pred_fallthru
    _
  // Predicated region
  $region6: #{net_forward.1} parent=0 // pred_check
    _
  $region7: #{net_forward.1} parent=0 // pred_check_branch
    %15 = sbr.rel (0) target = $region9
  $region8: #{net_forward.1} parent=0 // pred_region
    _
  $region9: #{net_forward.1} parent=0 // pred_fallthru
    _
  // Predicated region
  $region10: #{net_forward.1} parent=0 // pred_check
    _
  $region11: #{net_forward.1} parent=0 // pred_check_branch
    %17 = sbr.rel (0) target = $region13
  $region12: #{net_forward.1} parent=0 // pred_region
    _
  $region13: #{net_forward.1} parent=0 // pred_fallthru
    _
  // Predicated region
  $region14: #{net_forward.1} parent=0 // pred_check
    _
  $region15: #{net_forward.1} parent=0 // pred_check_branch
    %19 = sbr.rel (0) target = $region17
  $region16: #{net_forward.1} parent=0 // pred_region
    _
  $region17: #{net_forward.1} parent=0 // pred_fallthru
    _
  // Predicated region
  $region18: #{net_forward.1} parent=0 // pred_check
    _
  $region19: #{net_forward.1} parent=0 // pred_check_branch
    %21 = sbr.rel (0) target = $region21
  $region20: #{net_forward.1} parent=0 // pred_region
    _
  $region21: #{net_forward.1} parent=0 // pred_fallthru
    _
  // Predicated region
  $region22: #{net_forward.1} parent=0 // pred_check
    _
  $region23: #{net_forward.1} parent=0 // pred_check_branch
    %23 = sbr.rel (0) target = $region25
  $region24: #{net_forward.1} parent=0 // pred_region
    _
  $region25: #{net_forward.1} parent=0 // pred_fallthru
    _
  // Predicated region
  $region26: #{net_forward.1} parent=0 // pred_check
    _
  $region27: #{net_forward.1} parent=0 // pred_check_branch
    %25 = sbr.rel (0) target = $region29
  $region28: #{net_forward.1} parent=0 // pred_region
    _
  $region29: #{net_forward.1} parent=0 // pred_fallthru
    _
  %v27 = vld [vmem:[%s0] sm:$0xf]
  %v28 = vld [vmem:[%s0 + $0x4] sm:$0xf]
  %v29 = vld [vmem:[%s2] sm:$0xf]
  %v30 = vld [vmem:[%s2 + $0x4] sm:$0xf]
  %v31 = vld [vmem:[%s3] sm:$0xf]
  %v32 = vld [vmem:[%s3 + $0x4] sm:$0xf]
  %v33 = vld [vmem:[%s3 + $0x8] sm:$0xf]
  %v34 = vld [vmem:[%s3 + $0xc] sm:$0xf]
  %v35 = vld [vmem:[%s3 + $0x10] sm:$0xf]
  %v36 = vld [vmem:[%s3 + $0x14] sm:$0xf]
  %v37 = vld [vmem:[%s3 + $0x18] sm:$0xf]
  %v38 = vld [vmem:[%s3 + $0x1c] sm:$0xf]
  %v39 = vld [vmem:[%s3 + $0x20] sm:$0xf]
  %v40 = vld [vmem:[%s3 + $0x24] sm:$0xf]
  %v41 = vld [vmem:[%s3 + $0x28] sm:$0xf]
  %v42 = vld [vmem:[%s3 + $0x2c] sm:$0xf]
  %v43 = vld [vmem:[%s3 + $0x30] sm:$0xf]
  %v44 = vld [vmem:[%s3 + $0x34] sm:$0xf]
  %v45 = vld [vmem:[%s3 + $0x38] sm:$0xf]
  %v46 = vld [vmem:[%s3 + $0x3c] sm:$0xf]
  %v47 = vld [vmem:[%s3 + $0x40] sm:$0xf]
  %v48 = vld [vmem:[%s3 + $0x44] sm:$0xf]
  %v49 = vld [vmem:[%s3 + $0x48] sm:$0xf]
  %v50 = vld [vmem:[%s3 + $0x4c] sm:$0xf]
  %v51 = vld [vmem:[%s3 + $0x50] sm:$0xf]
  %v52 = vld [vmem:[%s3 + $0x54] sm:$0xf]
  %v53 = vld [vmem:[%s3 + $0x58] sm:$0xf]
  %v54 = vld [vmem:[%s3 + $0x5c] sm:$0xf]
  %v55 = vld [vmem:[%s3 + $0x60] sm:$0xf]
  %v56 = vld [vmem:[%s3 + $0x64] sm:$0xf]
  %v57 = vld [vmem:[%s3 + $0x68] sm:$0xf]
  %v58 = vld [vmem:[%s3 + $0x6c] sm:$0xf]
  %v59 = vld [vmem:[%s3 + $0x70] sm:$0xf]
  %v60 = vld [vmem:[%s3 + $0x74] sm:$0xf]
  %v61 = vld [vmem:[%s3 + $0x78] sm:$0xf]
  %v62 = vld [vmem:[%s3 + $0x7c] sm:$0xf]
  %v63 = vld [vmem:[%s4] sm:$0x3]
  %v66 = vunpack.c.l.b16 %v27
  %v67 = vunpack.c.l.b16 %v28
  %v68 = vpack.c.b16 %v67, %v66
  %v71 = vunpack.c.l.b16 %v29
  %v72 = vunpack.c.l.b16 %v30
  %v73 = vpack.c.b16 %v72, %v71
  %vm75 = vcmask 130048
  %v77 = vsel %vm75, %v68, 0
  %79 = vmatprep.subr.bf16.mxu0 0
  %80 = vmatpush1.bf16.msra.mxu0 %v73
  %81 = vmatprep.subr.bf16.mxu0 0
  %82 = vmatpush1.bf16.msra.mxu0 0
  %83 = vmatprep.subr.bf16.mxu0 0
  %84 = vmatpush1.bf16.msra.mxu0 0
  %85 = vmatprep.subr.bf16.mxu0 0
  %86 = vmatpush1.bf16.msra.mxu0 0
  %87 = vmatprep.subr.bf16.mxu0 0
  %88 = vmatpush1.bf16.msra.mxu0 0
  %89 = vmatprep.subr.bf16.mxu0 0
  %90 = vmatpush1.bf16.msra.mxu0 0
  %91 = vmatprep.subr.bf16.mxu0 0
  %92 = vmatpush1.bf16.msra.mxu0 0
  %93 = vmatprep.subr.bf16.mxu0 0
  %94 = vmatpush1.bf16.msra.mxu0 0
  %95 = vmatprep.subr.bf16.mxu0 0
  %96 = vmatpush1.bf16.msra.mxu0 0
  %97 = vmatprep.subr.bf16.mxu0 0
  %98 = vmatpush1.bf16.msra.mxu0 0
  %99 = vmatprep.subr.bf16.mxu0 0
  %100 = vmatpush1.bf16.msra.mxu0 0
  %101 = vmatprep.subr.bf16.mxu0 0
  %102 = vmatpush1.bf16.msra.mxu0 0
  %103 = vmatprep.subr.bf16.mxu0 0
  %104 = vmatpush1.bf16.msra.mxu0 0
  %105 = vmatprep.subr.bf16.mxu0 0
  %106 = vmatpush1.bf16.msra.mxu0 0
  %107 = vmatprep.subr.bf16.mxu0 0
  %108 = vmatpush1.bf16.msra.mxu0 0
  %109 = vmatprep.subr.bf16.mxu0 0
  %110 = vmatpush1.bf16.msra.mxu0 0
  %111 = vmatprep.mubr.bf16.mxu0 0
  %112 = vmatmul.mubr.bf16.gmra.mrb[0].mxu0 %v77
  %v113 = vpop.f32.mrb[0].mxu0
  %v114 = vadd.f32 0.0, %v113
  %v115 = vpop.f32.mrb[0].mxu0
  %v116 = vpop.f32.mrb[0].mxu0
  %v117 = vadd.f32 0.0, %v116
  %v118 = vpop.f32.mrb[0].mxu0
  %119 = vdwg.mxu0
  %v120 = vpack.c.bf16 %v117, %v114
  %v121 = vlaneseq
  %v122 = vshrl.u32 %v121, 7
  %v123 = vsub.s32 0, %v122
  %v124 = vrot.slane %v63, %v123
  %v141 = vunpack.c.l.b16 %v31
  %v142 = vunpack.c.l.b16 %v32
  %v143 = vunpack.c.l.b16 %v33
  %v144 = vunpack.c.l.b16 %v34
  %v145 = vunpack.c.l.b16 %v35
  %v146 = vunpack.c.l.b16 %v36
  %v147 = vunpack.c.l.b16 %v37
  %v148 = vunpack.c.l.b16 %v38
  %v149 = vunpack.c.l.b16 %v39
  %v150 = vunpack.c.l.b16 %v40
  %v151 = vunpack.c.l.b16 %v41
  %v152 = vunpack.c.l.b16 %v42
  %v153 = vunpack.c.l.b16 %v43
  %v154 = vunpack.c.l.b16 %v44
  %v155 = vunpack.c.l.b16 %v45
  %v156 = vunpack.c.l.b16 %v46
  %v157 = vpack.c.b16 %v142, %v141
  %v158 = vpack.c.b16 %v144, %v143
  %v159 = vpack.c.b16 %v146, %v145
  %v160 = vpack.c.b16 %v148, %v147
  %v161 = vpack.c.b16 %v150, %v149
  %v162 = vpack.c.b16 %v152, %v151
  %v163 = vpack.c.b16 %v154, %v153
  %v164 = vpack.c.b16 %v156, %v155
  %173 = vmatprep.subr.bf16.mxu0 0
  %174 = vmatpush1.bf16.msra.mxu0 %v157
  %175 = vmatprep.subr.bf16.mxu0 0
  %176 = vmatpush1.bf16.msra.mxu0 %v158
  %177 = vmatprep.subr.bf16.mxu0 0
  %178 = vmatpush1.bf16.msra.mxu0 %v159
  %179 = vmatprep.subr.bf16.mxu0 0
  %180 = vmatpush1.bf16.msra.mxu0 %v160
  %181 = vmatprep.subr.bf16.mxu0 0
  %182 = vmatpush1.bf16.msra.mxu0 %v161
  %183 = vmatprep.subr.bf16.mxu0 0
  %184 = vmatpush1.bf16.msra.mxu0 %v162
  %185 = vmatprep.subr.bf16.mxu0 0
  %186 = vmatpush1.bf16.msra.mxu0 %v163
  %187 = vmatprep.subr.bf16.mxu0 0
  %188 = vmatpush1.bf16.msra.mxu0 %v164
  %189 = vmatprep.subr.bf16.mxu0 0
  %190 = vmatpush1.bf16.msra.mxu0 0
  %191 = vmatprep.subr.bf16.mxu0 0
  %192 = vmatpush1.bf16.msra.mxu0 0
  %193 = vmatprep.subr.bf16.mxu0 0
  %194 = vmatpush1.bf16.msra.mxu0 0
  %195 = vmatprep.subr.bf16.mxu0 0
  %196 = vmatpush1.bf16.msra.mxu0 0
  %197 = vmatprep.subr.bf16.mxu0 0
  %198 = vmatpush1.bf16.msra.mxu0 0
  %199 = vmatprep.subr.bf16.mxu0 0
  %200 = vmatpush1.bf16.msra.mxu0 0
  %201 = vmatprep.subr.bf16.mxu0 0
  %202 = vmatpush1.bf16.msra.mxu0 0
  %203 = vmatprep.subr.bf16.mxu0 0
  %204 = vmatpush1.bf16.msra.mxu0 0
  %205 = vmatprep.mubr.bf16.mxu0 0
  %206 = vmatmul.mubr.bf16.gmra.mrb[0].mxu0 %v120
  %v207 = vpop.f32.mrb[0].mxu0
  %v208 = vadd.f32 %v124, %v207
  %v209 = vpop.f32.mrb[0].mxu0
  %v210 = vpop.f32.mrb[0].mxu0
  %v211 = vadd.f32 %v124, %v210
  %v212 = vpop.f32.mrb[0].mxu0
  %213 = vdwg.mxu0
  %v214 = vmax.f32 %v208, 0.0
  %v215 = vmax.f32 %v211, 0.0
  %v216 = vpack.c.bf16 %v215, %v214
  %v217 = vlaneseq
  %v218 = vshrl.u32 %v217, 7
  %v219 = vsub.s32 1, %v218
  %v220 = vrot.slane %v63, %v219
  %v237 = vunpack.c.l.b16 %v47
  %v238 = vunpack.c.l.b16 %v48
  %v239 = vunpack.c.l.b16 %v49
  %v240 = vunpack.c.l.b16 %v50
  %v241 = vunpack.c.l.b16 %v51
  %v242 = vunpack.c.l.b16 %v52
  %v243 = vunpack.c.l.b16 %v53
  %v244 = vunpack.c.l.b16 %v54
  %v245 = vunpack.c.l.b16 %v55
  %v246 = vunpack.c.l.b16 %v56
  %v247 = vunpack.c.l.b16 %v57
  %v248 = vunpack.c.l.b16 %v58
  %v249 = vunpack.c.l.b16 %v59
  %v250 = vunpack.c.l.b16 %v60
  %v251 = vunpack.c.l.b16 %v61
  %v252 = vunpack.c.l.b16 %v62
  %v253 = vpack.c.b16 %v238, %v237
  %v254 = vpack.c.b16 %v240, %v239
  %v255 = vpack.c.b16 %v242, %v241
  %v256 = vpack.c.b16 %v244, %v243
  %v257 = vpack.c.b16 %v246, %v245
  %v258 = vpack.c.b16 %v248, %v247
  %v259 = vpack.c.b16 %v250, %v249
  %v260 = vpack.c.b16 %v252, %v251
  %269 = vmatprep.subr.bf16.mxu0 0
  %270 = vmatpush1.bf16.msra.mxu0 %v253
  %271 = vmatprep.subr.bf16.mxu0 0
  %272 = vmatpush1.bf16.msra.mxu0 %v254
  %273 = vmatprep.subr.bf16.mxu0 0
  %274 = vmatpush1.bf16.msra.mxu0 %v255
  %275 = vmatprep.subr.bf16.mxu0 0
  %276 = vmatpush1.bf16.msra.mxu0 %v256
  %277 = vmatprep.subr.bf16.mxu0 0
  %278 = vmatpush1.bf16.msra.mxu0 %v257
  %279 = vmatprep.subr.bf16.mxu0 0
  %280 = vmatpush1.bf16.msra.mxu0 %v258
  %281 = vmatprep.subr.bf16.mxu0 0
  %282 = vmatpush1.bf16.msra.mxu0 %v259
  %283 = vmatprep.subr.bf16.mxu0 0
  %284 = vmatpush1.bf16.msra.mxu0 %v260
  %285 = vmatprep.subr.bf16.mxu0 0
  %286 = vmatpush1.bf16.msra.mxu0 0
  %287 = vmatprep.subr.bf16.mxu0 0
  %288 = vmatpush1.bf16.msra.mxu0 0
  %289 = vmatprep.subr.bf16.mxu0 0
  %290 = vmatpush1.bf16.msra.mxu0 0
  %291 = vmatprep.subr.bf16.mxu0 0
  %292 = vmatpush1.bf16.msra.mxu0 0
  %293 = vmatprep.subr.bf16.mxu0 0
  %294 = vmatpush1.bf16.msra.mxu0 0
  %295 = vmatprep.subr.bf16.mxu0 0
  %296 = vmatpush1.bf16.msra.mxu0 0
  %297 = vmatprep.subr.bf16.mxu0 0
  %298 = vmatpush1.bf16.msra.mxu0 0
  %299 = vmatprep.subr.bf16.mxu0 0
  %300 = vmatpush1.bf16.msra.mxu0 0
  %301 = vmatprep.mubr.bf16.mxu0 0
  %302 = vmatmul.mubr.bf16.gmra.mrb[0].mxu0 %v216
  %v303 = vpop.f32.mrb[0].mxu0
  %v304 = vadd.f32 %v220, %v303
  %v305 = vpop.f32.mrb[0].mxu0
  %v306 = vpop.f32.mrb[0].mxu0
  %v307 = vadd.f32 %v220, %v306
  %v308 = vpop.f32.mrb[0].mxu0
  %309 = vdwg.mxu0
  %v310 = vmax.f32 %v304, 0.0
  %v311 = vmax.f32 %v307, 0.0
  %v312 = vpack.c.bf16 %v311, %v310
  %s313 = scalar_lea.vmem %s3, 128
  %v314 = vld [vmem:[%s313] sm:$0xf]
  %v315 = vld [vmem:[%s313 + $0x4] sm:$0xf]
  %v316 = vld [vmem:[%s313 + $0x8] sm:$0xf]
  %v317 = vld [vmem:[%s313 + $0xc] sm:$0xf]
  %v318 = vld [vmem:[%s313 + $0x10] sm:$0xf]
  %v319 = vld [vmem:[%s313 + $0x14] sm:$0xf]
  %v320 = vld [vmem:[%s313 + $0x18] sm:$0xf]
  %v321 = vld [vmem:[%s313 + $0x1c] sm:$0xf]
  %v322 = vld [vmem:[%s313 + $0x20] sm:$0xf]
  %v323 = vld [vmem:[%s313 + $0x24] sm:$0xf]
  %v324 = vld [vmem:[%s313 + $0x28] sm:$0xf]
  %v325 = vld [vmem:[%s313 + $0x2c] sm:$0xf]
  %v326 = vld [vmem:[%s313 + $0x30] sm:$0xf]
  %v327 = vld [vmem:[%s313 + $0x34] sm:$0xf]
  %v328 = vld [vmem:[%s313 + $0x38] sm:$0xf]
  %v329 = vld [vmem:[%s313 + $0x3c] sm:$0xf]
  %v330 = vld [vmem:[%s313 + $0x40] sm:$0xf]
  %v331 = vld [vmem:[%s313 + $0x44] sm:$0xf]
  %v332 = vld [vmem:[%s313 + $0x48] sm:$0xf]
  %v333 = vld [vmem:[%s313 + $0x4c] sm:$0xf]
  %v334 = vld [vmem:[%s313 + $0x50] sm:$0xf]
  %v335 = vld [vmem:[%s313 + $0x54] sm:$0xf]
  %v336 = vld [vmem:[%s313 + $0x58] sm:$0xf]
  %v337 = vld [vmem:[%s313 + $0x5c] sm:$0xf]
  %v338 = vld [vmem:[%s313 + $0x60] sm:$0xf]
  %v339 = vld [vmem:[%s313 + $0x64] sm:$0xf]
  %v340 = vld [vmem:[%s313 + $0x68] sm:$0xf]
  %v341 = vld [vmem:[%s313 + $0x6c] sm:$0xf]
  %v342 = vld [vmem:[%s313 + $0x70] sm:$0xf]
  %v343 = vld [vmem:[%s313 + $0x74] sm:$0xf]
  %v344 = vld [vmem:[%s313 + $0x78] sm:$0xf]
  %v345 = vld [vmem:[%s313 + $0x7c] sm:$0xf]
  %s346 = scalar_lea.vmem %s4, 2
  %v347 = vld [vmem:[%s346] sm:$0x3]
  %348 = vmatprep.subr.bf16.mxu0 0
  %349 = vmatpush1.bf16.msra.mxu0 %v312
  %350 = vmatprep.subr.bf16.mxu0 0
  %351 = vmatpush1.bf16.msra.mxu0 0
  %352 = vmatprep.subr.bf16.mxu0 0
  %353 = vmatpush1.bf16.msra.mxu0 0
  %354 = vmatprep.subr.bf16.mxu0 0
  %355 = vmatpush1.bf16.msra.mxu0 0
  %356 = vmatprep.subr.bf16.mxu0 0
  %357 = vmatpush1.bf16.msra.mxu0 0
  %358 = vmatprep.subr.bf16.mxu0 0
  %359 = vmatpush1.bf16.msra.mxu0 0
  %360 = vmatprep.subr.bf16.mxu0 0
  %361 = vmatpush1.bf16.msra.mxu0 0
  %362 = vmatprep.subr.bf16.mxu0 0
  %363 = vmatpush1.bf16.msra.mxu0 0
  %364 = vmatprep.subr.bf16.mxu0 0
  %365 = vmatpush1.bf16.msra.mxu0 0
  %366 = vmatprep.subr.bf16.mxu0 0
  %367 = vmatpush1.bf16.msra.mxu0 0
  %368 = vmatprep.subr.bf16.mxu0 0
  %369 = vmatpush1.bf16.msra.mxu0 0
  %370 = vmatprep.subr.bf16.mxu0 0
  %371 = vmatpush1.bf16.msra.mxu0 0
  %372 = vmatprep.subr.bf16.mxu0 0
  %373 = vmatpush1.bf16.msra.mxu0 0
  %374 = vmatprep.subr.bf16.mxu0 0
  %375 = vmatpush1.bf16.msra.mxu0 0
  %376 = vmatprep.subr.bf16.mxu0 0
  %377 = vmatpush1.bf16.msra.mxu0 0
  %378 = vmatprep.subr.bf16.mxu0 0
  %379 = vmatpush1.bf16.msra.mxu0 0
  %380 = vmatprep.mubr.bf16.mxu0 0
  %381 = vmatmul.mubr.bf16.gmra.mrb[0].mxu0 %v77
  %v382 = vpop.f32.mrb[0].mxu0
  %v383 = vadd.f32 0.0, %v382
  %v384 = vpop.f32.mrb[0].mxu0
  %v385 = vpop.f32.mrb[0].mxu0
  %v386 = vadd.f32 0.0, %v385
  %v387 = vpop.f32.mrb[0].mxu0
  %388 = vdwg.mxu0
  %v389 = vpack.c.bf16 %v386, %v383
  %v390 = vlaneseq
  %v391 = vshrl.u32 %v390, 7
  %v392 = vsub.s32 0, %v391
  %v393 = vrot.slane %v347, %v392
  %v410 = vunpack.c.l.b16 %v314
  %v411 = vunpack.c.l.b16 %v315
  %v412 = vunpack.c.l.b16 %v316
  %v413 = vunpack.c.l.b16 %v317
  %v414 = vunpack.c.l.b16 %v318
  %v415 = vunpack.c.l.b16 %v319
  %v416 = vunpack.c.l.b16 %v320
  %v417 = vunpack.c.l.b16 %v321
  %v418 = vunpack.c.l.b16 %v322
  %v419 = vunpack.c.l.b16 %v323
  %v420 = vunpack.c.l.b16 %v324
  %v421 = vunpack.c.l.b16 %v325
  %v422 = vunpack.c.l.b16 %v326
  %v423 = vunpack.c.l.b16 %v327
  %v424 = vunpack.c.l.b16 %v328
  %v425 = vunpack.c.l.b16 %v329
  %v426 = vpack.c.b16 %v411, %v410
  %v427 = vpack.c.b16 %v413, %v412
  %v428 = vpack.c.b16 %v415, %v414
  %v429 = vpack.c.b16 %v417, %v416
  %v430 = vpack.c.b16 %v419, %v418
  %v431 = vpack.c.b16 %v421, %v420
  %v432 = vpack.c.b16 %v423, %v422
  %v433 = vpack.c.b16 %v425, %v424
  %442 = vmatprep.subr.bf16.mxu0 0
  %443 = vmatpush1.bf16.msra.mxu0 %v426
  %444 = vmatprep.subr.bf16.mxu0 0
  %445 = vmatpush1.bf16.msra.mxu0 %v427
  %446 = vmatprep.subr.bf16.mxu0 0
  %447 = vmatpush1.bf16.msra.mxu0 %v428
  %448 = vmatprep.subr.bf16.mxu0 0
  %449 = vmatpush1.bf16.msra.mxu0 %v429
  %450 = vmatprep.subr.bf16.mxu0 0
  %451 = vmatpush1.bf16.msra.mxu0 %v430
  %452 = vmatprep.subr.bf16.mxu0 0
  %453 = vmatpush1.bf16.msra.mxu0 %v431
  %454 = vmatprep.subr.bf16.mxu0 0
  %455 = vmatpush1.bf16.msra.mxu0 %v432
  %456 = vmatprep.subr.bf16.mxu0 0
  %457 = vmatpush1.bf16.msra.mxu0 %v433
  %458 = vmatprep.subr.bf16.mxu0 0
  %459 = vmatpush1.bf16.msra.mxu0 0
  %460 = vmatprep.subr.bf16.mxu0 0
  %461 = vmatpush1.bf16.msra.mxu0 0
  %462 = vmatprep.subr.bf16.mxu0 0
  %463 = vmatpush1.bf16.msra.mxu0 0
  %464 = vmatprep.subr.bf16.mxu0 0
  %465 = vmatpush1.bf16.msra.mxu0 0
  %466 = vmatprep.subr.bf16.mxu0 0
  %467 = vmatpush1.bf16.msra.mxu0 0
  %468 = vmatprep.subr.bf16.mxu0 0
  %469 = vmatpush1.bf16.msra.mxu0 0
  %470 = vmatprep.subr.bf16.mxu0 0
  %471 = vmatpush1.bf16.msra.mxu0 0
  %472 = vmatprep.subr.bf16.mxu0 0
  %473 = vmatpush1.bf16.msra.mxu0 0
  %474 = vmatprep.mubr.bf16.mxu0 0
  %475 = vmatmul.mubr.bf16.gmra.mrb[0].mxu0 %v389
  %v476 = vpop.f32.mrb[0].mxu0
  %v477 = vadd.f32 %v393, %v476
  %v478 = vpop.f32.mrb[0].mxu0
  %v479 = vpop.f32.mrb[0].mxu0
  %v480 = vadd.f32 %v393, %v479
  %v481 = vpop.f32.mrb[0].mxu0
  %482 = vdwg.mxu0
  %v483 = vmax.f32 %v477, 0.0
  %v484 = vmax.f32 %v480, 0.0
  %v485 = vpack.c.bf16 %v484, %v483
  %v486 = vlaneseq
  %v487 = vshrl.u32 %v486, 7
  %v488 = vsub.s32 1, %v487
  %v489 = vrot.slane %v347, %v488
  %v506 = vunpack.c.l.b16 %v330
  %v507 = vunpack.c.l.b16 %v331
  %v508 = vunpack.c.l.b16 %v332
  %v509 = vunpack.c.l.b16 %v333
  %v510 = vunpack.c.l.b16 %v334
  %v511 = vunpack.c.l.b16 %v335
  %v512 = vunpack.c.l.b16 %v336
  %v513 = vunpack.c.l.b16 %v337
  %v514 = vunpack.c.l.b16 %v338
  %v515 = vunpack.c.l.b16 %v339
  %v516 = vunpack.c.l.b16 %v340
  %v517 = vunpack.c.l.b16 %v341
  %v518 = vunpack.c.l.b16 %v342
  %v519 = vunpack.c.l.b16 %v343
  %v520 = vunpack.c.l.b16 %v344
  %v521 = vunpack.c.l.b16 %v345
  %v522 = vpack.c.b16 %v507, %v506
  %v523 = vpack.c.b16 %v509, %v508
  %v524 = vpack.c.b16 %v511, %v510
  %v525 = vpack.c.b16 %v513, %v512
  %v526 = vpack.c.b16 %v515, %v514
  %v527 = vpack.c.b16 %v517, %v516
  %v528 = vpack.c.b16 %v519, %v518
  %v529 = vpack.c.b16 %v521, %v520
  %538 = vmatprep.subr.bf16.mxu0 0
  %539 = vmatpush1.bf16.msra.mxu0 %v522
  %540 = vmatprep.subr.bf16.mxu0 0
  %541 = vmatpush1.bf16.msra.mxu0 %v523
  %542 = vmatprep.subr.bf16.mxu0 0
  %543 = vmatpush1.bf16.msra.mxu0 %v524
  %544 = vmatprep.subr.bf16.mxu0 0
  %545 = vmatpush1.bf16.msra.mxu0 %v525
  %546 = vmatprep.subr.bf16.mxu0 0
  %547 = vmatpush1.bf16.msra.mxu0 %v526
  %548 = vmatprep.subr.bf16.mxu0 0
  %549 = vmatpush1.bf16.msra.mxu0 %v527
  %550 = vmatprep.subr.bf16.mxu0 0
  %551 = vmatpush1.bf16.msra.mxu0 %v528
  %552 = vmatprep.subr.bf16.mxu0 0
  %553 = vmatpush1.bf16.msra.mxu0 %v529
  %554 = vmatprep.subr.bf16.mxu0 0
  %555 = vmatpush1.bf16.msra.mxu0 0
  %556 = vmatprep.subr.bf16.mxu0 0
  %557 = vmatpush1.bf16.msra.mxu0 0
  %558 = vmatprep.subr.bf16.mxu0 0
  %559 = vmatpush1.bf16.msra.mxu0 0
  %560 = vmatprep.subr.bf16.mxu0 0
  %561 = vmatpush1.bf16.msra.mxu0 0
  %562 = vmatprep.subr.bf16.mxu0 0
  %563 = vmatpush1.bf16.msra.mxu0 0
  %564 = vmatprep.subr.bf16.mxu0 0
  %565 = vmatpush1.bf16.msra.mxu0 0
  %566 = vmatprep.subr.bf16.mxu0 0
  %567 = vmatpush1.bf16.msra.mxu0 0
  %568 = vmatprep.subr.bf16.mxu0 0
  %569 = vmatpush1.bf16.msra.mxu0 0
  %570 = vmatprep.mubr.bf16.mxu0 0
  %571 = vmatmul.mubr.bf16.gmra.mrb[0].mxu0 %v485
  %v572 = vpop.f32.mrb[0].mxu0
  %v573 = vadd.f32 %v489, %v572
  %v574 = vpop.f32.mrb[0].mxu0
  %v575 = vpop.f32.mrb[0].mxu0
  %v576 = vadd.f32 %v489, %v575
  %v577 = vpop.f32.mrb[0].mxu0
  %578 = vdwg.mxu0
  %v579 = vmax.f32 %v573, 0.0
  %v580 = vmax.f32 %v576, 0.0
  %v581 = vpack.c.bf16 %v580, %v579
  %v582 = vld [vmem:[%s1] sm:$0xf]
  %v583 = vld [vmem:[%s1 + $0x4] sm:$0xf]
  %v586 = vunpack.c.l.b16 %v582
  %v587 = vunpack.c.l.b16 %v583
  %v588 = vpack.c.b16 %v587, %v586
  %v590 = vsel %vm75, %v588, 0
  %592 = vmatprep.subr.bf16.mxu0 0
  %593 = vmatpush1.bf16.msra.mxu0 %v581
  %594 = vmatprep.subr.bf16.mxu0 0
  %595 = vmatpush1.bf16.msra.mxu0 0
  %596 = vmatprep.subr.bf16.mxu0 0
  %597 = vmatpush1.bf16.msra.mxu0 0
  %598 = vmatprep.subr.bf16.mxu0 0
  %599 = vmatpush1.bf16.msra.mxu0 0
  %600 = vmatprep.subr.bf16.mxu0 0
  %601 = vmatpush1.bf16.msra.mxu0 0
  %602 = vmatprep.subr.bf16.mxu0 0
  %603 = vmatpush1.bf16.msra.mxu0 0
  %604 = vmatprep.subr.bf16.mxu0 0
  %605 = vmatpush1.bf16.msra.mxu0 0
  %606 = vmatprep.subr.bf16.mxu0 0
  %607 = vmatpush1.bf16.msra.mxu0 0
  %608 = vmatprep.subr.bf16.mxu0 0
  %609 = vmatpush1.bf16.msra.mxu0 0
  %610 = vmatprep.subr.bf16.mxu0 0
  %611 = vmatpush1.bf16.msra.mxu0 0
  %612 = vmatprep.subr.bf16.mxu0 0
  %613 = vmatpush1.bf16.msra.mxu0 0
  %614 = vmatprep.subr.bf16.mxu0 0
  %615 = vmatpush1.bf16.msra.mxu0 0
  %616 = vmatprep.subr.bf16.mxu0 0
  %617 = vmatpush1.bf16.msra.mxu0 0
  %618 = vmatprep.subr.bf16.mxu0 0
  %619 = vmatpush1.bf16.msra.mxu0 0
  %620 = vmatprep.subr.bf16.mxu0 0
  %621 = vmatpush1.bf16.msra.mxu0 0
  %622 = vmatprep.subr.bf16.mxu0 0
  %623 = vmatpush1.bf16.msra.mxu0 0
  %624 = vmatprep.mubr.bf16.mxu0 0
  %625 = vmatmul.mubr.bf16.gmra.mrb[0].mxu0 %v590
  %v626 = vpop.f32.mrb[0].mxu0
  %v627 = vadd.f32 0.0, %v626
  %v628 = vpop.f32.mrb[0].mxu0
  %v629 = vpop.f32.mrb[0].mxu0
  %v630 = vadd.f32 0.0, %v629
  %v631 = vpop.f32.mrb[0].mxu0
  %632 = vdwg.mxu0
  %v633 = vld [vmem:[%s5] sm:$0xf]
  %v634 = vld [vmem:[%s5 + $0x4] sm:$0xf]
  %v635 = vld [vmem:[%s5 + $0x8] sm:$0xf]
  %v636 = vld [vmem:[%s5 + $0xc] sm:$0xf]
  %v637 = vld [vmem:[%s5 + $0x10] sm:$0xf]
  %v638 = vld [vmem:[%s5 + $0x14] sm:$0xf]
  %v639 = vld [vmem:[%s5 + $0x18] sm:$0xf]
  %v640 = vld [vmem:[%s5 + $0x1c] sm:$0xf]
  %v641 = vld [vmem:[%s5 + $0x20] sm:$0xf]
  %v642 = vld [vmem:[%s5 + $0x24] sm:$0xf]
  %v643 = vld [vmem:[%s5 + $0x28] sm:$0xf]
  %v644 = vld [vmem:[%s5 + $0x2c] sm:$0xf]
  %v645 = vld [vmem:[%s5 + $0x30] sm:$0xf]
  %v646 = vld [vmem:[%s5 + $0x34] sm:$0xf]
  %v647 = vld [vmem:[%s5 + $0x38] sm:$0xf]
  %v648 = vld [vmem:[%s5 + $0x3c] sm:$0xf]
  %v649 = vld [vmem:[%s5 + $0x40] sm:$0xf]
  %v650 = vld [vmem:[%s5 + $0x44] sm:$0xf]
  %v651 = vld [vmem:[%s5 + $0x48] sm:$0xf]
  %v652 = vld [vmem:[%s5 + $0x4c] sm:$0xf]
  %v653 = vld [vmem:[%s5 + $0x50] sm:$0xf]
  %v654 = vld [vmem:[%s5 + $0x54] sm:$0xf]
  %v655 = vld [vmem:[%s5 + $0x58] sm:$0xf]
  %v656 = vld [vmem:[%s5 + $0x5c] sm:$0xf]
  %v657 = vld [vmem:[%s5 + $0x60] sm:$0xf]
  %v658 = vld [vmem:[%s5 + $0x64] sm:$0xf]
  %v659 = vld [vmem:[%s5 + $0x68] sm:$0xf]
  %v660 = vld [vmem:[%s5 + $0x6c] sm:$0xf]
  %v661 = vld [vmem:[%s5 + $0x70] sm:$0xf]
  %v662 = vld [vmem:[%s5 + $0x74] sm:$0xf]
  %v663 = vld [vmem:[%s5 + $0x78] sm:$0xf]
  %v664 = vld [vmem:[%s5 + $0x7c] sm:$0xf]
  %v665 = vld [vmem:[%s6] sm:$0x3]
  %v666 = vpack.c.bf16 %v630, %v627
  %v667 = vlaneseq
  %v668 = vshrl.u32 %v667, 7
  %v669 = vsub.s32 0, %v668
  %v670 = vrot.slane %v665, %v669
  %v687 = vunpack.c.l.b16 %v633
  %v688 = vunpack.c.l.b16 %v634
  %v689 = vunpack.c.l.b16 %v635
  %v690 = vunpack.c.l.b16 %v636
  %v691 = vunpack.c.l.b16 %v637
  %v692 = vunpack.c.l.b16 %v638
  %v693 = vunpack.c.l.b16 %v639
  %v694 = vunpack.c.l.b16 %v640
  %v695 = vunpack.c.l.b16 %v641
  %v696 = vunpack.c.l.b16 %v642
  %v697 = vunpack.c.l.b16 %v643
  %v698 = vunpack.c.l.b16 %v644
  %v699 = vunpack.c.l.b16 %v645
  %v700 = vunpack.c.l.b16 %v646
  %v701 = vunpack.c.l.b16 %v647
  %v702 = vunpack.c.l.b16 %v648
  %v703 = vpack.c.b16 %v688, %v687
  %v704 = vpack.c.b16 %v690, %v689
  %v705 = vpack.c.b16 %v692, %v691
  %v706 = vpack.c.b16 %v694, %v693
  %v707 = vpack.c.b16 %v696, %v695
  %v708 = vpack.c.b16 %v698, %v697
  %v709 = vpack.c.b16 %v700, %v699
  %v710 = vpack.c.b16 %v702, %v701
  %719 = vmatprep.subr.bf16.mxu0 0
  %720 = vmatpush1.bf16.msra.mxu0 %v703
  %721 = vmatprep.subr.bf16.mxu0 0
  %722 = vmatpush1.bf16.msra.mxu0 %v704
  %723 = vmatprep.subr.bf16.mxu0 0
  %724 = vmatpush1.bf16.msra.mxu0 %v705
  %725 = vmatprep.subr.bf16.mxu0 0
  %726 = vmatpush1.bf16.msra.mxu0 %v706
  %727 = vmatprep.subr.bf16.mxu0 0
  %728 = vmatpush1.bf16.msra.mxu0 %v707
  %729 = vmatprep.subr.bf16.mxu0 0
  %730 = vmatpush1.bf16.msra.mxu0 %v708
  %731 = vmatprep.subr.bf16.mxu0 0
  %732 = vmatpush1.bf16.msra.mxu0 %v709
  %733 = vmatprep.subr.bf16.mxu0 0
  %734 = vmatpush1.bf16.msra.mxu0 %v710
  %735 = vmatprep.subr.bf16.mxu0 0
  %736 = vmatpush1.bf16.msra.mxu0 0
  %737 = vmatprep.subr.bf16.mxu0 0
  %738 = vmatpush1.bf16.msra.mxu0 0
  %739 = vmatprep.subr.bf16.mxu0 0
  %740 = vmatpush1.bf16.msra.mxu0 0
  %741 = vmatprep.subr.bf16.mxu0 0
  %742 = vmatpush1.bf16.msra.mxu0 0
  %743 = vmatprep.subr.bf16.mxu0 0
  %744 = vmatpush1.bf16.msra.mxu0 0
  %745 = vmatprep.subr.bf16.mxu0 0
  %746 = vmatpush1.bf16.msra.mxu0 0
  %747 = vmatprep.subr.bf16.mxu0 0
  %748 = vmatpush1.bf16.msra.mxu0 0
  %749 = vmatprep.subr.bf16.mxu0 0
  %750 = vmatpush1.bf16.msra.mxu0 0
  %751 = vmatprep.mubr.bf16.mxu0 0
  %752 = vmatmul.mubr.bf16.gmra.mrb[0].mxu0 %v666
  %v753 = vpop.f32.mrb[0].mxu0
  %v754 = vadd.f32 %v670, %v753
  %v755 = vpop.f32.mrb[0].mxu0
  %v756 = vpop.f32.mrb[0].mxu0
  %v757 = vadd.f32 %v670, %v756
  %v758 = vpop.f32.mrb[0].mxu0
  %759 = vdwg.mxu0
  %v760 = vmax.f32 %v754, 0.0
  %v761 = vmax.f32 %v757, 0.0
  %v762 = vpack.c.bf16 %v761, %v760
  %v763 = vlaneseq
  %v764 = vshrl.u32 %v763, 7
  %v765 = vsub.s32 1, %v764
  %v766 = vrot.slane %v665, %v765
  %v783 = vunpack.c.l.b16 %v649
  %v784 = vunpack.c.l.b16 %v650
  %v785 = vunpack.c.l.b16 %v651
  %v786 = vunpack.c.l.b16 %v652
  %v787 = vunpack.c.l.b16 %v653
  %v788 = vunpack.c.l.b16 %v654
  %v789 = vunpack.c.l.b16 %v655
  %v790 = vunpack.c.l.b16 %v656
  %v791 = vunpack.c.l.b16 %v657
  %v792 = vunpack.c.l.b16 %v658
  %v793 = vunpack.c.l.b16 %v659
  %v794 = vunpack.c.l.b16 %v660
  %v795 = vunpack.c.l.b16 %v661
  %v796 = vunpack.c.l.b16 %v662
  %v797 = vunpack.c.l.b16 %v663
  %v798 = vunpack.c.l.b16 %v664
  %v799 = vpack.c.b16 %v784, %v783
  %v800 = vpack.c.b16 %v786, %v785
  %v801 = vpack.c.b16 %v788, %v787
  %v802 = vpack.c.b16 %v790, %v789
  %v803 = vpack.c.b16 %v792, %v791
  %v804 = vpack.c.b16 %v794, %v793
  %v805 = vpack.c.b16 %v796, %v795
  %v806 = vpack.c.b16 %v798, %v797
  %815 = vmatprep.subr.bf16.mxu0 0
  %816 = vmatpush1.bf16.msra.mxu0 %v799
  %817 = vmatprep.subr.bf16.mxu0 0
  %818 = vmatpush1.bf16.msra.mxu0 %v800
  %819 = vmatprep.subr.bf16.mxu0 0
  %820 = vmatpush1.bf16.msra.mxu0 %v801
  %821 = vmatprep.subr.bf16.mxu0 0
  %822 = vmatpush1.bf16.msra.mxu0 %v802
  %823 = vmatprep.subr.bf16.mxu0 0
  %824 = vmatpush1.bf16.msra.mxu0 %v803
  %825 = vmatprep.subr.bf16.mxu0 0
  %826 = vmatpush1.bf16.msra.mxu0 %v804
  %827 = vmatprep.subr.bf16.mxu0 0
  %828 = vmatpush1.bf16.msra.mxu0 %v805
  %829 = vmatprep.subr.bf16.mxu0 0
  %830 = vmatpush1.bf16.msra.mxu0 %v806
  %831 = vmatprep.subr.bf16.mxu0 0
  %832 = vmatpush1.bf16.msra.mxu0 0
  %833 = vmatprep.subr.bf16.mxu0 0
  %834 = vmatpush1.bf16.msra.mxu0 0
  %835 = vmatprep.subr.bf16.mxu0 0
  %836 = vmatpush1.bf16.msra.mxu0 0
  %837 = vmatprep.subr.bf16.mxu0 0
  %838 = vmatpush1.bf16.msra.mxu0 0
  %839 = vmatprep.subr.bf16.mxu0 0
  %840 = vmatpush1.bf16.msra.mxu0 0
  %841 = vmatprep.subr.bf16.mxu0 0
  %842 = vmatpush1.bf16.msra.mxu0 0
  %843 = vmatprep.subr.bf16.mxu0 0
  %844 = vmatpush1.bf16.msra.mxu0 0
  %845 = vmatprep.subr.bf16.mxu0 0
  %846 = vmatpush1.bf16.msra.mxu0 0
  %847 = vmatprep.mubr.bf16.mxu0 0
  %848 = vmatmul.mubr.bf16.gmra.mrb[0].mxu0 %v762
  %v849 = vpop.f32.mrb[0].mxu0
  %v850 = vadd.f32 %v766, %v849
  %v851 = vpop.f32.mrb[0].mxu0
  %v852 = vpop.f32.mrb[0].mxu0
  %v853 = vadd.f32 %v766, %v852
  %v854 = vpop.f32.mrb[0].mxu0
  %855 = vdwg.mxu0
  %856 = vst [vmem:[%s7] sm:$0xff] %v850
  %857 = vst [vmem:[%s7 + $0x8] sm:$0xff] %v853
  // Predicated region
  $region30: #{net_forward.1} parent=0 // pred_check
    _
  $region31: #{net_forward.1} parent=0 // pred_check_branch
    %859 = sbr.rel (0) target = $region33
  $region32: #{net_forward.1} parent=0 // pred_region
    _
  $region33: #{net_forward.1} parent=0 // pred_fallthru
    _
  // Predicated region
  $region34: #{net_forward.1} parent=0 // pred_check
    _
  $region35: #{net_forward.1} parent=0 // pred_check_branch
    %861 = sbr.rel (0) target = $region37
  $region36: #{net_forward.1} parent=0 // pred_region
    _
  $region37: #{net_forward.1} parent=0 // pred_fallthru
    _

</llo_original>
